<compile_context>
chip_gen: v7x
topology: tpu7x:2x2x1
jax: 0.10.0
libtpu: 0.0.40
codegen_flags: <defaults>
</compile_context>

<pallas_src>
import functools

import jax
import jax.numpy as jnp
from jax.experimental import pallas as pl
from jax.experimental.pallas import tpu as pltpu

_LANES = 128
_SUBLANES = 8
_ROW_ALIGN = 32          # sublane-tile multiple for f32/bf16/int8 inputs
_VMEM_TILE_BUDGET = 12 * 1024 * 1024   # double-buffered input tiles (3 inputs x 2 buffers)


def _round_up(x, m):
    return (x + m - 1) // m * m


def _vfl_kernel(pred_ref, gt_ref, label_ref, out_ref, *, gamma, alpha, valid_rows):
    """Elementwise VFL on a (tile_rows, W) block, reduced to an (8, W) partial sum."""
    x = pred_ref[...].astype(jnp.float32)      # logits
    y = gt_ref[...].astype(jnp.float32)        # soft gt score
    lab = label_ref[...].astype(jnp.float32)   # binary label

    # sigmoid via a single EUP tanh; sigmoid(|x|) is reused for the stable BCE log term,
    # so the whole elementwise body needs only two EUP transcendentals (tanh, log).
    sig = 0.5 * (jnp.tanh(0.5 * x) + 1.0)                # sigmoid(x)
    s_abs = jnp.where(x >= 0.0, sig, 1.0 - sig)          # sigmoid(|x|) in [0.5, 1]

    # sigmoid(x)^gamma without jnp.power for small integer gamma (default gamma=2).
    if float(gamma) == float(int(gamma)) and 1.0 <= float(gamma) <= 4.0:
        sig_pow = sig
        for _ in range(int(gamma) - 1):
            sig_pow = sig_pow * sig
    else:
        sig_pow = jnp.power(sig, gamma)                   # generic fallback

    weight = alpha * sig_pow * (1.0 - lab) + y * lab

    # BCEWithLogits (reduction='none'), numerically stable:
    #   max(x,0) - x*y + log1p(exp(-|x|)) == max(x,0) - x*y - log(sigmoid(|x|))
    bce = jnp.maximum(x, 0.0) - x * y - jnp.log(s_abs)

    prod = bce * weight                                   # (tile_rows, W)
    rows, w = prod.shape

    if valid_rows is not None:
        # Mask rows beyond the real array extent (Pallas pads ragged last blocks with
        # undefined data).  where() (not multiply) so garbage NaN/Inf cannot leak in.
        rid = pl.program_id(0) * rows + jax.lax.broadcasted_iota(jnp.int32, (rows, w), 0)
        prod = jnp.where(rid < valid_rows, prod, 0.0)

    groups = rows // _SUBLANES
    if groups % 8 == 0 and groups >= 16:
        # Two-stage tree: 8 independent accumulation chains expose VALU ILP instead of a
        # single (groups)-deep dependent-add chain (matters on v7x).
        t = prod.reshape(8, groups // 8, _SUBLANES, w)
        out_ref[...] = t.sum(axis=1).sum(axis=0)
    else:
        out_ref[...] = prod.reshape(groups, _SUBLANES, w).sum(axis=0)


def varifocal_loss(pred_score, gt_score, label, *, gamma=2.0, alpha=0.75, tile_rows=4096):
    """Pallas implementation of VarifocalLoss.forward. Returns a scalar float32."""
    n, c = pred_score.shape
    total = n * c

    # Copy-free 2-D layout selection (no padding, no concatenate, no extra HBM pass).
    if total % _LANES == 0:
        m, w = total // _LANES, _LANES               # lane-dense; reshape is a bitcast
        p2 = pred_score.reshape(m, w)
        g2 = gt_score.reshape(m, w)
        l2 = label.reshape(m, w)
    else:
        m, w = n, c                                  # natural layout, streamed as-is
        p2, g2, l2 = pred_score, gt_score, label

    # Tile-row choice: 32-aligned, capped by a VMEM budget for 3 inputs x 2 buffers
    # (worst-case f32, lanes padded to 128 in VMEM).
    row_bytes = _round_up(w, _LANES) * 4
    tr_cap = max(_ROW_ALIGN, (_VMEM_TILE_BUDGET // (6 * row_bytes)))
    tr = min(int(tile_rows), tr_cap, _round_up(m, _ROW_ALIGN))
    tr = max(_ROW_ALIGN, tr // _ROW_ALIGN * _ROW_ALIGN)
    num_tiles = pl.cdiv(m, tr)

    # Only mask inside the kernel if the last tile is ragged.
    valid_rows = m if (m % tr) != 0 else None

    kernel = functools.partial(
        _vfl_kernel, gamma=float(gamma), alpha=float(alpha), valid_rows=valid_rows
    )

    partials = pl.pallas_call(
        kernel,
        out_shape=jax.ShapeDtypeStruct((num_tiles * _SUBLANES, w), jnp.float32),
        grid_spec=pltpu.PrefetchScalarGridSpec(
            num_scalar_prefetch=0,
            grid=(num_tiles,),
            in_specs=[
                pl.BlockSpec((tr, w), lambda i: (i, 0)),
                pl.BlockSpec((tr, w), lambda i: (i, 0)),
                pl.BlockSpec((tr, w), lambda i: (i, 0)),
            ],
            out_specs=pl.BlockSpec((_SUBLANES, w), lambda i: (i, 0)),
        ),
        compiler_params=pltpu.CompilerParams(
            # Independent tiles -> megacore-shardable; verify on v7x via xprof that both
            # TensorCores pick up grid iterations (switch to CORE_PARALLEL if not).
            dimension_semantics=("parallel",),
            vmem_limit_bytes=32 * 1024 * 1024,
        ),
    )(p2, g2, l2)

    # mean over classes then sum over samples == sum(everything) / C
    return jnp.sum(partials) / jnp.float32(c)


def varifocal_loss_ref(pred_score, gt_score, label, gamma=2.0, alpha=0.75):
    """Pure-JAX reference mirroring the PyTorch forward exactly."""
    x = pred_score.astype(jnp.float32)
    y = gt_score.astype(jnp.float32)
    lab = label.astype(jnp.float32)
    weight = alpha * jax.nn.sigmoid(x) ** gamma * (1.0 - lab) + y * lab
    bce = jnp.maximum(x, 0.0) - x * y + jnp.log1p(jnp.exp(-jnp.abs(x)))
    return (bce * weight).mean(axis=1).sum()


if __name__ == "__main__":
    # VarifocalLoss has no learnable parameters; gamma/alpha are the __init__ defaults.
    gamma, alpha = 2.0, 0.75
    key = jax.random.PRNGKey(0)

    def make_inputs(k, n, c):
        k1, k2, k3 = jax.random.split(k, 3)
        pred = jax.random.normal(k1, (n, c), dtype=jnp.float32) * 2.0   # logits
        gt = jax.random.uniform(k2, (n, c), dtype=jnp.float32)          # soft targets
        lab = (jax.random.uniform(k3, (n, c)) > 0.8).astype(jnp.float32)
        return pred, gt, lab

    # 1) Small shapes consistent with the module (lane-dense path, single ragged tile).
    k0, k1, k2 = jax.random.split(key, 3)
    p, g, l = make_inputs(k0, 64, 8)
    loss = jax.block_until_ready(varifocal_loss(p, g, l, gamma=gamma, alpha=alpha))
    ref = varifocal_loss_ref(p, g, l, gamma, alpha)
    assert jnp.allclose(loss, ref, rtol=1e-3, atol=1e-3), (loss, ref)

    # 2) Multi-tile with a ragged last tile (lane-dense path, small tile_rows to force it).
    p, g, l = make_inputs(k1, 1000, 16)
    loss = jax.block_until_ready(
        varifocal_loss(p, g, l, gamma=gamma, alpha=alpha, tile_rows=32)
    )
    ref = varifocal_loss_ref(p, g, l, gamma, alpha)
    assert jnp.allclose(loss, ref, rtol=1e-3, atol=1e-3), (loss, ref)

    # 3) N*C not divisible by 128 -> natural (N, C) layout path (zero data movement).
    p, g, l = make_inputs(k2, 37, 5)
    loss = jax.block_until_ready(varifocal_loss(p, g, l, gamma=gamma, alpha=alpha))
    ref = varifocal_loss_ref(p, g, l, gamma, alpha)
    assert jnp.allclose(loss, ref, rtol=1e-3, atol=1e-3), (loss, ref)

    print("KERNEL_OK")
</pallas_src>

<mosaic_0001>
module attributes {stable_mosaic.version = 11 : i64} {
  func.func @_vfl_kernel(%arg0: i32, %arg1: memref<32x128xf32, #tpu.memory_space<vmem>>, %arg2: memref<32x128xf32, #tpu.memory_space<vmem>>, %arg3: memref<32x128xf32, #tpu.memory_space<vmem>>, %arg4: memref<8x128xf32, #tpu.memory_space<vmem>>) attributes {dimension_semantics = [#tpu.dimension_semantics<parallel>], iteration_bounds = array<i64: 1>, scalar_prefetch = 0 : i64, scratch_operands = 0 : i64, tpu.core_type = #tpu.core_type<tc>, window_params = [{transform_indices = @transform_0, window_bounds = array<i64: 32, 128>}, {transform_indices = @transform_1, window_bounds = array<i64: 32, 128>}, {transform_indices = @transform_2, window_bounds = array<i64: 32, 128>}, {transform_indices = @transform_3, window_bounds = array<i64: 8, 128>}]} {
    %c0 = arith.constant 0 : index
    %c0_0 = arith.constant 0 : index
    %0 = vector.load %arg1[%c0, %c0_0] : memref<32x128xf32, #tpu.memory_space<vmem>>, vector<32x128xf32>
    %c0_1 = arith.constant 0 : index
    %c0_2 = arith.constant 0 : index
    %1 = vector.load %arg2[%c0_1, %c0_2] : memref<32x128xf32, #tpu.memory_space<vmem>>, vector<32x128xf32>
    %c0_3 = arith.constant 0 : index
    %c0_4 = arith.constant 0 : index
    %2 = vector.load %arg3[%c0_3, %c0_4] : memref<32x128xf32, #tpu.memory_space<vmem>>, vector<32x128xf32>
    %cst = arith.constant 5.000000e-01 : f32
    %3 = vector.broadcast %cst : f32 to vector<32x128xf32>
    %4 = arith.mulf %3, %0 : vector<32x128xf32>
    %5 = math.tanh %4 : vector<32x128xf32>
    %cst_5 = arith.constant 1.000000e+00 : f32
    %6 = vector.broadcast %cst_5 : f32 to vector<32x128xf32>
    %7 = arith.addf %5, %6 : vector<32x128xf32>
    %cst_6 = arith.constant 5.000000e-01 : f32
    %8 = vector.broadcast %cst_6 : f32 to vector<32x128xf32>
    %9 = arith.mulf %8, %7 : vector<32x128xf32>
    %cst_7 = arith.constant 0.000000e+00 : f32
    %10 = vector.broadcast %cst_7 : f32 to vector<32x128xf32>
    %11 = arith.cmpf oge, %0, %10 : vector<32x128xf32>
    %cst_8 = arith.constant 1.000000e+00 : f32
    %12 = vector.broadcast %cst_8 : f32 to vector<32x128xf32>
    %13 = arith.subf %12, %9 : vector<32x128xf32>
    %14 = arith.select %11, %9, %13 : vector<32x128xi1>, vector<32x128xf32>
    %15 = arith.mulf %9, %9 : vector<32x128xf32>
    %cst_9 = arith.constant 7.500000e-01 : f32
    %16 = vector.broadcast %cst_9 : f32 to vector<32x128xf32>
    %17 = arith.mulf %16, %15 : vector<32x128xf32>
    %cst_10 = arith.constant 1.000000e+00 : f32
    %18 = vector.broadcast %cst_10 : f32 to vector<32x128xf32>
    %19 = arith.subf %18, %2 : vector<32x128xf32>
    %20 = arith.mulf %17, %19 : vector<32x128xf32>
    %21 = arith.mulf %1, %2 : vector<32x128xf32>
    %22 = arith.addf %20, %21 : vector<32x128xf32>
    %cst_11 = arith.constant 0.000000e+00 : f32
    %23 = vector.broadcast %cst_11 : f32 to vector<32x128xf32>
    %24 = arith.maximumf %0, %23 : vector<32x128xf32>
    %25 = arith.mulf %0, %1 : vector<32x128xf32>
    %26 = arith.subf %24, %25 : vector<32x128xf32>
    %27 = math.log %14 : vector<32x128xf32>
    %28 = arith.subf %26, %27 : vector<32x128xf32>
    %29 = arith.mulf %28, %22 : vector<32x128xf32>
    %c32_i32 = arith.constant 32 : i32
    %30 = arith.muli %arg0, %c32_i32 : i32
    %31 = tpu.iota {dimensions = array<i32: 0>} : vector<32x128xi32>
    %32 = vector.broadcast %30 : i32 to vector<32x128xi32>
    %33 = arith.addi %32, %31 : vector<32x128xi32>
    %c4_i32 = arith.constant 4 : i32
    %34 = vector.broadcast %c4_i32 : i32 to vector<32x128xi32>
    %35 = arith.cmpi slt, %33, %34 : vector<32x128xi32>
    %cst_12 = arith.constant 0.000000e+00 : f32
    %36 = vector.broadcast %cst_12 : f32 to vector<32x128xf32>
    %37 = arith.select %35, %29, %36 : vector<32x128xi1>, vector<32x128xf32>
    %38 = vector.shape_cast %37 : vector<32x128xf32> to vector<4x8x128xf32>
    %cst_13 = arith.constant dense<0.000000e+00> : vector<8x128xf32>
    %39 = vector.multi_reduction <add>, %38, %cst_13 [0] : vector<4x8x128xf32> to vector<8x128xf32>
    %c0_14 = arith.constant 0 : index
    %c0_15 = arith.constant 0 : index
    %40 = vector.load %arg4[%c0_14, %c0_15] : memref<8x128xf32, #tpu.memory_space<vmem>>, vector<8x128xf32>
    tpu.vector_store %arg4[%c0_14, %c0_15], %39 {strides = array<i32>} : memref<8x128xf32, #tpu.memory_space<vmem>>, vector<8x128xf32>,
    return
  }
  func.func @transform_0(%arg0: i32) -> (i32, i32) {
    %c0_i32 = arith.constant 0 : i32
    %c0_i32_0 = arith.constant 0 : i32
    return %arg0, %c0_i32 : i32, i32
  }
  func.func @transform_1(%arg0: i32) -> (i32, i32) {
    %c0_i32 = arith.constant 0 : i32
    %c0_i32_0 = arith.constant 0 : i32
    return %arg0, %c0_i32 : i32, i32
  }
  func.func @transform_2(%arg0: i32) -> (i32, i32) {
    %c0_i32 = arith.constant 0 : i32
    %c0_i32_0 = arith.constant 0 : i32
    return %arg0, %c0_i32 : i32, i32
  }
  func.func @transform_3(%arg0: i32) -> (i32, i32) {
    %c0_i32 = arith.constant 0 : i32
    %c0_i32_0 = arith.constant 0 : i32
    return %arg0, %c0_i32 : i32, i32
  }
}

</mosaic_0001>

<llo_original>
// kernel: tpu_custom_call.1
$region0: #{tpu_custom_call.1}
  #allocation0 [shape = 'u32[]', space=smem, size = 0x4, offset = 0x4, fixed_abs, tag = 'smem constant byte address 0x4 - core index']
  #allocation1 [shape = 'u32[144,128]{1,0:T(1,128)}', space=vmem, size = 0x12000, scoped, tag = 'internal scratch']
  %s0 = inlined_call_operand.hbm [shape: f32[4,128], index: 0, kind: input, shape index: {}]
  %s1 = inlined_call_operand.hbm [shape: f32[4,128], index: 1, kind: input, shape index: {}]
  %s2 = inlined_call_operand.vmem [shape: f32[4,128], index: 2, kind: input, shape index: {}]
  %s3 = inlined_call_operand.hbm [shape: f32[8,128], index: 3, kind: output, shape index: {}]
  %s4 = sld [smem:[#allocation0]]
  $region30: #{tpu_custom_call.1} parent=0
    _
  %s6 = ssub.s32 1, %s4
  %s7 = scalar_select 0, %s6, %s4
  $region1: #{tpu_custom_call.1} parent=0
    #allocation2 [shape = 'u8[16384]{0}', space=vmem, size = 0x4000, scoped, tag = 'input window, operand 0, single buffered']
    #allocation3 [shape = 's32[1]{0}', space=sflag, size = 0x4, scoped, tag = 'scoped memory for tpu_custom_call.1']
    #allocation4 [shape = 's32[1]{0}', space=sflag, size = 0x4, scoped, tag = 'scoped memory for tpu_custom_call.1']
    #allocation5 [shape = 'u8[16384]{0}', space=vmem, size = 0x4000, scoped, tag = 'input window, operand 1, single buffered']
    #allocation6 [shape = 's32[1]{0}', space=sflag, size = 0x4, scoped, tag = 'scoped memory for tpu_custom_call.1']
    #allocation7 [shape = 'u8[4096]{0}', space=vmem, size = 0x1000, scoped, tag = 'output window, operand 0, single buffered']
    %8 = vsyncpa [#allocation3], 0
    %9 = vsyncpa [#allocation6], 0
    %10 = vsyncpa [#allocation4], 0
    // Predicated region
    $region2: #{tpu_custom_call.1} parent=1 // pred_check
      _
    $region3: #{tpu_custom_call.1} parent=1 // pred_check_branch
      %12 = sbr.rel (0) target = $region5
    $region4: #{tpu_custom_call.1} parent=1 // pred_region
      %s14 = ssub.s32 512, 64
      %15 = vsyncadd [#allocation3], %s14
      %s16 = sshll.u32 [#allocation2], 4
      %s17 = int_to_ptr.vmem [resolvable:$true] %s16
      %22 = dma.hbm_to_vmem [thread:$0]  %s0, 64, %s17, [#allocation3], 64, 64, 4
    $region5: #{tpu_custom_call.1} parent=1 // pred_fallthru
      _
    // Predicated region
    $region6: #{tpu_custom_call.1} parent=1 // pred_check
      _
    $region7: #{tpu_custom_call.1} parent=1 // pred_check_branch
      %24 = sbr.rel (0) target = $region9
    $region8: #{tpu_custom_call.1} parent=1 // pred_region
      %s26 = ssub.s32 512, 64
      %27 = vsyncadd [#allocation6], %s26
      %s28 = sshll.u32 [#allocation5], 4
      %s29 = int_to_ptr.vmem [resolvable:$true] %s28
      %34 = dma.hbm_to_vmem [thread:$0]  %s1, 64, %s29, [#allocation6], 64, 64, 4
    $region9: #{tpu_custom_call.1} parent=1 // pred_fallthru
      _
    // Predicated region
    $region10: #{tpu_custom_call.1} parent=1 // pred_check
      _
    $region11: #{tpu_custom_call.1} parent=1 // pred_check_branch
      %36 = sbr.rel (0) target = $region13
    $region12: #{tpu_custom_call.1} parent=1 // pred_region
      _
    $region13: #{tpu_custom_call.1} parent=1 // pred_fallthru
      _
    // Predicated region
    $region14: #{tpu_custom_call.1} parent=1 // pred_check
      _
    $region15: #{tpu_custom_call.1} parent=1 // pred_check_branch
      %38 = sbr.rel (0) target = $region17
    $region16: #{tpu_custom_call.1} parent=1 // pred_region
      %39 = dma.done [#allocation3], 512
    $region17: #{tpu_custom_call.1} parent=1 // pred_fallthru
      _
    // Predicated region
    $region18: #{tpu_custom_call.1} parent=1 // pred_check
      _
    $region19: #{tpu_custom_call.1} parent=1 // pred_check_branch
      %41 = sbr.rel (0) target = $region21
    $region20: #{tpu_custom_call.1} parent=1 // pred_region
      %42 = dma.done [#allocation6], 512
    $region21: #{tpu_custom_call.1} parent=1 // pred_fallthru
      _
    %v43 = vld [vmem:[#allocation2] sm:$0xff]
    %v44 = vld [vmem:[#allocation2 + $0x8] sm:$0xff]
    %v45 = vld [vmem:[#allocation2 + $0x10] sm:$0xff]
    %v46 = vld [vmem:[#allocation2 + $0x18] sm:$0xff]
    %v47 = vld [vmem:[#allocation5] sm:$0xff]
    %v48 = vld [vmem:[#allocation5 + $0x8] sm:$0xff]
    %v49 = vld [vmem:[#allocation5 + $0x10] sm:$0xff]
    %v50 = vld [vmem:[#allocation5 + $0x18] sm:$0xff]
    %v51 = vld [vmem:[%s2] sm:$0xff]
    %v52 = vld [vmem:[%s2 + $0x8] sm:$0xff]
    %v53 = vld [vmem:[%s2 + $0x10] sm:$0xff]
    %v54 = vld [vmem:[%s2 + $0x18] sm:$0xff]
    %v55 = vmul.f32 %v43, 0.5
    %v56 = vmul.f32 %v44, 0.5
    %v57 = vmul.f32 %v45, 0.5
    %v58 = vmul.f32 %v46, 0.5
    %v59 = vtanh.pop %v55
    %v60 = vtanh.pop %v56
    %v61 = vtanh.pop %v57
    %v62 = vtanh.pop %v58
    %v63 = vadd.f32 %v59, 1.0
    %v64 = vadd.f32 %v60, 1.0
    %v65 = vadd.f32 %v61, 1.0
    %v66 = vadd.f32 %v62, 1.0
    %v67 = vmul.f32 %v63, 0.5
    %v68 = vmul.f32 %v64, 0.5
    %v69 = vmul.f32 %v65, 0.5
    %v70 = vmul.f32 %v66, 0.5
    %vm71 = vcmp.ge.f32.partialorder %v43, 0.0
    %vm72 = vcmp.ge.f32.partialorder %v44, 0.0
    %vm73 = vcmp.ge.f32.partialorder %v45, 0.0
    %vm74 = vcmp.ge.f32.partialorder %v46, 0.0
    %v75 = vsub.f32 1.0, %v67
    %v76 = vsub.f32 1.0, %v68
    %v77 = vsub.f32 1.0, %v69
    %v78 = vsub.f32 1.0, %v70
    %v79 = vsel %vm71, %v67, %v75
    %v80 = vsel %vm72, %v68, %v76
    %v81 = vsel %vm73, %v69, %v77
    %v82 = vsel %vm74, %v70, %v78
    %v83 = vmul.f32 %v67, %v67
    %v84 = vmul.f32 %v68, %v68
    %v85 = vmul.f32 %v69, %v69
    %v86 = vmul.f32 %v70, %v70
    %v87 = vmul.f32 %v83, 0.75
    %v88 = vmul.f32 %v84, 0.75
    %v89 = vmul.f32 %v85, 0.75
    %v90 = vmul.f32 %v86, 0.75
    %v91 = vsub.f32 1.0, %v51
    %v92 = vsub.f32 1.0, %v52
    %v93 = vsub.f32 1.0, %v53
    %v94 = vsub.f32 1.0, %v54
    %v95 = vmul.f32 %v87, %v91
    %v96 = vmul.f32 %v88, %v92
    %v97 = vmul.f32 %v89, %v93
    %v98 = vmul.f32 %v90, %v94
    %v99 = vmul.f32 %v47, %v51
    %v100 = vmul.f32 %v48, %v52
    %v101 = vmul.f32 %v49, %v53
    %v102 = vmul.f32 %v50, %v54
    %v103 = vadd.f32 %v95, %v99
    %v104 = vadd.f32 %v96, %v100
    %v105 = vadd.f32 %v97, %v101
    %v106 = vadd.f32 %v98, %v102
    %v107 = vmax.f32 %v43, 0.0
    %v108 = vmax.f32 %v44, 0.0
    %v109 = vmax.f32 %v45, 0.0
    %v110 = vmax.f32 %v46, 0.0
    %v111 = vmul.f32 %v43, %v47
    %v112 = vmul.f32 %v44, %v48
    %v113 = vmul.f32 %v45, %v49
    %v114 = vmul.f32 %v46, %v50
    %v115 = vsub.f32 %v107, %v111
    %v116 = vsub.f32 %v108, %v112
    %v117 = vsub.f32 %v109, %v113
    %v118 = vsub.f32 %v110, %v114
    %v119 = vlog2.pop %v79
    %v120 = vmul.f32 %v119, 0.6931472
    %v121 = vlog2.pop %v80
    %v122 = vmul.f32 %v121, 0.6931472
    %v123 = vlog2.pop %v81
    %v124 = vmul.f32 %v123, 0.6931472
    %v125 = vlog2.pop %v82
    %v126 = vmul.f32 %v125, 0.6931472
    %v127 = vsub.f32 %v115, %v120
    %v128 = vsub.f32 %v116, %v122
    %v129 = vsub.f32 %v117, %v124
    %v130 = vsub.f32 %v118, %v126
    %v131 = vmul.f32 %v127, %v103
    %v132 = vmul.f32 %v128, %v104
    %v133 = vmul.f32 %v129, %v105
    %v134 = vmul.f32 %v130, %v106
    %s135 = smul.u32 0, 32
    %v136 = vlaneseq
    %v137 = vshrl.u32 %v136, 7
    %v138 = vadd.s32 %v137, 8
    %v139 = vadd.s32 %v137, 16
    %v140 = vadd.s32 %v137, 24
    %v141 = vstv %s135
    %v142 = vadd.s32 %v141, %v137
    %v143 = vadd.s32 %v141, %v138
    %v144 = vadd.s32 %v141, %v139
    %v145 = vadd.s32 %v141, %v140
    %vm146 = vcmp.lt.s32.totalorder %v142, 4
    %vm147 = vcmp.lt.s32.totalorder %v143, 4
    %vm148 = vcmp.lt.s32.totalorder %v144, 4
    %vm149 = vcmp.lt.s32.totalorder %v145, 4
    %v150 = vsel %vm146, %v131, 0.0
    %v151 = vsel %vm147, %v132, 0.0
    %v152 = vsel %vm148, %v133, 0.0
    %v153 = vsel %vm149, %v134, 0.0
    %v154 = vadd.f32 %v150, %v151
    %v155 = vadd.f32 %v154, %v152
    %v156 = vadd.f32 %v155, %v153
    %157 = vst [vmem:[#allocation7] sm:$0xff] %v156
    // Predicated region
    $region22: #{tpu_custom_call.1} parent=1 // pred_check
      _
    $region23: #{tpu_custom_call.1} parent=1 // pred_check_branch
      %159 = sbr.rel (0) target = $region25
    $region24: #{tpu_custom_call.1} parent=1 // pred_region
      %s161 = ssub.s32 128, 128
      %162 = vsyncadd [#allocation4], %s161
      %s164 = sshll.u32 [#allocation7], 4
      %s165 = int_to_ptr.vmem [resolvable:$true] %s164
      %167 = dma.vmem_to_hbm [thread:$0]  %s165, 128, %s3, [#allocation4]
    $region25: #{tpu_custom_call.1} parent=1 // pred_fallthru
      _
    // Predicated region
    $region26: #{tpu_custom_call.1} parent=1 // pred_check
      _
    $region27: #{tpu_custom_call.1} parent=1 // pred_check_branch
      %169 = sbr.rel (0) target = $region29
    $region28: #{tpu_custom_call.1} parent=1 // pred_region
      %170 = dma.done [#allocation4], 128
    $region29: #{tpu_custom_call.1} parent=1 // pred_fallthru
      _
    %171 = vsyncpa [#allocation3], 1
    %172 = vsyncpa [#allocation6], 1
    %173 = vsyncpa [#allocation4], 1

</llo_original>
